<compile_context>
chip_gen: v5e
topology: v5e:2x2
jax: 0.10.0
libtpu: 0.0.40
codegen_flags: <defaults>
</compile_context>

<pallas_src>
import jax
import jax.numpy as jnp
from jax import lax
from jax.experimental import pallas as pl
from jax.experimental.pallas import tpu as pltpu


def derived_model_kernel(x_ref, w1_ref, b1_ref, w2_ref, b2_ref, out_ref):
    # x : (TB, H) batch tile in the ORIGINAL layout (no transpose anywhere).
    # w1: (H_out, H_in) PyTorch Linear layout.  b1/w2: (1, H) rows.  b2: SMEM scalar.
    x = x_ref[...]

    # pre_output: Linear(H, H) + ReLU (Dropout is identity at inference).
    # Contract x's H_in axis against w1's H_in axis directly -> (TB, H_out),
    # one MXU GEMM with f32 accumulation, no transposed operands needed.
    h = lax.dot_general(
        x, w1_ref[...],
        dimension_numbers=(((1,), (1,)), ((), ())),
        preferred_element_type=jnp.float32,
    )
    h = jnp.maximum(h + b1_ref[...], 0.0)                      # (TB, H)

    # output: Linear(H, 1) on VPU (elementwise mul) + XLU (lane reduce) instead
    # of a width-1 MXU matmul; bias is a free scalar read from SMEM.
    logits = jnp.sum(h * w2_ref[...], axis=1, keepdims=True) + b2_ref[0]  # (TB, 1)

    # preds_proxy = sigmoid(logits)
    out_ref[...] = jax.nn.sigmoid(logits)
    # TODO(synk): BCEWithLogitsLoss vs. all-ones targets and the >=0.5 hard
    # preds are computed in the original forward() but never returned; omitted.


def _round_up(x, m):
    return ((x + m - 1) // m) * m


@jax.jit
def derived_model(features, w1, b1, w2, b2):
    """features: (B, H); w1: (H, H) [out,in]; b1: (H,); w2: (1, H); b2: (1,)."""
    B, H = features.shape

    x = features.astype(jnp.float32)
    w1f = w1.astype(jnp.float32)
    b1_row = b1.reshape(1, H).astype(jnp.float32)
    w2_row = w2.reshape(1, H).astype(jnp.float32)
    b2_s = b2.reshape(1).astype(jnp.float32)

    # Batch tile: multiple of 8 sublanes; 512 rows per tile at production sizes
    # keeps the streamed-features pipeline near the HBM roofline while the
    # parameters stay VMEM-resident.  At B=8 this is a single 8-row tile.
    TB = 512 if B >= 512 else _round_up(B, 8)
    B_pad = _round_up(B, TB)
    if B_pad != B:
        # Zero-pad instead of tail-masking; padded rows are sliced off below,
        # so garbage values are never part of the returned output.
        x = jnp.pad(x, ((0, B_pad - B), (0, 0)))

    out = pl.pallas_call(
        derived_model_kernel,
        out_shape=jax.ShapeDtypeStruct((B_pad, 1), jnp.float32),
        grid=(B_pad // TB,),
        in_specs=[
            pl.BlockSpec((TB, H), lambda i: (i, 0)),             # features tile (streamed)
            pl.BlockSpec((H, H), lambda i: (0, 0)),              # W1 (VMEM-resident)
            pl.BlockSpec((1, H), lambda i: (0, 0)),              # b1 row
            pl.BlockSpec((1, H), lambda i: (0, 0)),              # w2 row
            pl.BlockSpec(memory_space=pltpu.MemorySpace.SMEM),   # b2 scalar
        ],
        out_specs=pl.BlockSpec((TB, 1), lambda i: (i, 0)),
        compiler_params=pltpu.CompilerParams(
            dimension_semantics=("parallel",),                   # shard batch tiles across TCs
        ),
    )(x, w1f, b1_row, w2_row, b2_s)

    return out[:B]                                               # (B, 1) module contract


def reference(features, w1, b1, w2, b2):
    h = jnp.maximum(
        jnp.dot(features, w1.T, precision=lax.Precision.HIGHEST) + b1, 0.0)
    logits = jnp.dot(h, w2.T, precision=lax.Precision.HIGHEST) + b2
    return jax.nn.sigmoid(logits)


if __name__ == "__main__":
    B, H = 8, 32  # batch, hidden (feature) dim

    key = jax.random.PRNGKey(0)
    kx, kw1, kb1, kw2, kb2 = jax.random.split(key, 5)

    # Deterministic synthetic parameters in PyTorch Linear layouts.
    features = jax.random.normal(kx, (B, H), dtype=jnp.float32)
    w1 = jax.random.normal(kw1, (H, H), dtype=jnp.float32) * 0.05   # pre_output.weight (out, in)
    b1 = jax.random.normal(kb1, (H,), dtype=jnp.float32) * 0.05     # pre_output.bias
    w2 = jax.random.normal(kw2, (1, H), dtype=jnp.float32) * 0.05   # output.weight (1, H)
    b2 = jax.random.normal(kb2, (1,), dtype=jnp.float32) * 0.05     # output.bias

    out = jax.block_until_ready(derived_model(features, w1, b1, w2, b2))

    ref = reference(features, w1, b1, w2, b2)
    assert out.shape == (B, 1), out.shape
    assert jnp.allclose(out, ref, atol=1e-4, rtol=1e-4), (out, ref)

    print("KERNEL_OK")
</pallas_src>

<mosaic_0001>
module attributes {stable_mosaic.version = 11 : i64} {
  func.func @derived_model_kernel(%arg0: i32, %arg1: memref<8x32xf32, #tpu.memory_space<vmem>>, %arg2: memref<32x32xf32, #tpu.memory_space<vmem>>, %arg3: memref<1x32xf32, #tpu.memory_space<vmem>>, %arg4: memref<1x32xf32, #tpu.memory_space<vmem>>, %arg5: memref<1xf32, #tpu.memory_space<smem>>, %arg6: memref<8x1xf32, #tpu.memory_space<vmem>>) attributes {dimension_semantics = [#tpu.dimension_semantics<parallel>], iteration_bounds = array<i64: 1>, scalar_prefetch = 0 : i64, scratch_operands = 0 : i64, tpu.core_type = #tpu.core_type<tc>, window_params = [{transform_indices = @transform_0, window_bounds = array<i64: 8, 32>}, {pipeline_mode = #tpu.pipeline_mode<synchronous>, transform_indices = @transform_1, window_bounds = array<i64: 32, 32>}, {pipeline_mode = #tpu.pipeline_mode<synchronous>, transform_indices = @transform_2, window_bounds = array<i64: 1, 32>}, {pipeline_mode = #tpu.pipeline_mode<synchronous>, transform_indices = @transform_3, window_bounds = array<i64: 1, 32>}, {transform_indices = @transform_4, window_bounds = array<i64: 1>}, {transform_indices = @transform_5, window_bounds = array<i64: 8, 1>}]} {
    %c0 = arith.constant 0 : index
    %c0_0 = arith.constant 0 : index
    %0 = vector.load %arg1[%c0, %c0_0] : memref<8x32xf32, #tpu.memory_space<vmem>>, vector<8x32xf32>
    %c0_1 = arith.constant 0 : index
    %c0_2 = arith.constant 0 : index
    %1 = vector.load %arg2[%c0_1, %c0_2] : memref<32x32xf32, #tpu.memory_space<vmem>>, vector<32x32xf32>
    %cst = arith.constant dense<0.000000e+00> : vector<8x32xf32>
    %2 = tpu.matmul %0, %1, %cst {dimension_numbers = #tpu.dot_dimension_numbers<[1], [1], [0], [0], [0, 0, 1, 0], [], []>} : vector<8x32xf32>, vector<32x32xf32>, vector<8x32xf32> -> vector<8x32xf32>
    %c0_3 = arith.constant 0 : index
    %c0_4 = arith.constant 0 : index
    %3 = vector.load %arg3[%c0_3, %c0_4] : memref<1x32xf32, #tpu.memory_space<vmem>>, vector<1x32xf32>
    %4 = vector.broadcast %3 : vector<1x32xf32> to vector<8x32xf32>
    %5 = arith.addf %2, %4 : vector<8x32xf32>
    %cst_5 = arith.constant 0.000000e+00 : f32
    %6 = vector.broadcast %cst_5 : f32 to vector<8x32xf32>
    %7 = arith.maximumf %5, %6 : vector<8x32xf32>
    %c0_6 = arith.constant 0 : index
    %c0_7 = arith.constant 0 : index
    %8 = vector.load %arg4[%c0_6, %c0_7] : memref<1x32xf32, #tpu.memory_space<vmem>>, vector<1x32xf32>
    %9 = vector.broadcast %8 : vector<1x32xf32> to vector<8x32xf32>
    %10 = arith.mulf %7, %9 : vector<8x32xf32>
    %cst_8 = arith.constant dense<0.000000e+00> : vector<8xf32>
    %11 = vector.multi_reduction <add>, %10, %cst_8 [1] : vector<8x32xf32> to vector<8xf32>
    %12 = vector.shape_cast %11 : vector<8xf32> to vector<8x1xf32>
    %c0_9 = arith.constant 0 : index
    %13 = memref.load %arg5[%c0_9] : memref<1xf32, #tpu.memory_space<smem>>
    %14 = vector.broadcast %13 : f32 to vector<8x1xf32>
    %15 = arith.addf %12, %14 : vector<8x1xf32>
    %16 = arith.negf %15 : vector<8x1xf32>
    %17 = math.exp %16 : vector<8x1xf32>
    %cst_10 = arith.constant 1.000000e+00 : f32
    %18 = vector.broadcast %cst_10 : f32 to vector<8x1xf32>
    %19 = arith.addf %18, %17 : vector<8x1xf32>
    %20 = arith.divf %18, %19 : vector<8x1xf32>
    %c0_11 = arith.constant 0 : index
    %c0_12 = arith.constant 0 : index
    %21 = vector.load %arg6[%c0_11, %c0_12] : memref<8x1xf32, #tpu.memory_space<vmem>>, vector<8x1xf32>
    tpu.vector_store %arg6[%c0_11, %c0_12], %20 {strides = array<i32>} : memref<8x1xf32, #tpu.memory_space<vmem>>, vector<8x1xf32>,
    return
  }
  func.func @transform_0(%arg0: i32) -> (i32, i32) {
    %c0_i32 = arith.constant 0 : i32
    %c0_i32_0 = arith.constant 0 : i32
    return %arg0, %c0_i32 : i32, i32
  }
  func.func @transform_1(%arg0: i32) -> (i32, i32) {
    %c0_i32 = arith.constant 0 : i32
    %c0_i32_0 = arith.constant 0 : i32
    %c0_i32_1 = arith.constant 0 : i32
    return %c0_i32, %c0_i32_0 : i32, i32
  }
  func.func @transform_2(%arg0: i32) -> (i32, i32) {
    %c0_i32 = arith.constant 0 : i32
    %c0_i32_0 = arith.constant 0 : i32
    %c0_i32_1 = arith.constant 0 : i32
    return %c0_i32, %c0_i32_0 : i32, i32
  }
  func.func @transform_3(%arg0: i32) -> (i32, i32) {
    %c0_i32 = arith.constant 0 : i32
    %c0_i32_0 = arith.constant 0 : i32
    %c0_i32_1 = arith.constant 0 : i32
    return %c0_i32, %c0_i32_0 : i32, i32
  }
  func.func @transform_4(%arg0: i32) -> i32 {
    %c0_i32 = arith.constant 0 : i32
    %c0_i32_0 = arith.constant 0 : i32
    return %c0_i32 : i32
  }
  func.func @transform_5(%arg0: i32) -> (i32, i32) {
    %c0_i32 = arith.constant 0 : i32
    %c0_i32_0 = arith.constant 0 : i32
    return %arg0, %c0_i32 : i32, i32
  }
}

</mosaic_0001>

<llo_original>
// kernel: derived_model.1
$region0: #{derived_model.1}
  #allocation0 [shape = 'u32[]', space=smem, size = 0x4, offset = 0x4, fixed_abs, tag = 'smem constant byte address 0x4 - core index']
  #allocation1 [shape = 'u32[72,128]{1,0:T(1,128)}', space=vmem, size = 0x9000, scoped, tag = 'internal scratch']
  #allocation2 [shape = 'f32[1]{0:T(128)S(6)}', space=smem, size = 0x200, scoped, tag = 'scoped memory for derived_model.1']
  %s0 = inlined_call_operand.hbm [shape: f32[8,32], index: 0, kind: input, shape index: {}]
  %s1 = inlined_call_operand.hbm [shape: f32[32,32], index: 1, kind: input, shape index: {}]
  %s2 = inlined_call_operand.vmem [shape: f32[1,32], index: 2, kind: input, shape index: {}]
  %s3 = inlined_call_operand.vmem [shape: f32[1,32], index: 3, kind: input, shape index: {}]
  %s4 = inlined_call_operand.<no memory space> [shape: f32[1], index: 4, kind: input, shape index: {}]
  %s5 = inlined_call_operand.vmem [shape: f32[8,1], index: 5, kind: output, shape index: {}]
  %s6 = sld [smem:[#allocation0]]
  $region38: #{derived_model.1} parent=0
    _
  %s8 = ssub.s32 1, %s6
  %s9 = scalar_select 0, %s8, %s6
  %10 = sst [smem:[#allocation2]] %s4
  $region1: #{derived_model.1} parent=0
    #allocation3 [shape = 'u8[4096]{0}', space=vmem, size = 0x1000, scoped, tag = 'input window, operand 0, single buffered']
    #allocation4 [shape = 's32[1]{0}', space=sflag, size = 0x4, scoped, tag = 'scoped memory for derived_model.1']
    #allocation5 [shape = 'u8[16384]{0}', space=vmem, size = 0x4000, scoped, tag = 'input window, operand 1, single buffered']
    #allocation6 [shape = 's32[1]{0}', space=sflag, size = 0x4, scoped, tag = 'scoped memory for derived_model.1']
    %11 = vsyncpa [#allocation4], 0
    %12 = vsyncpa [#allocation6], 0
    // Predicated region
    $region2: #{derived_model.1} parent=1 // pred_check
      _
    $region3: #{derived_model.1} parent=1 // pred_check_branch
      %14 = sbr.rel (0) target = $region5
    $region4: #{derived_model.1} parent=1 // pred_region
      %16 = vsyncadd [#allocation4], 0
      %s18 = sshll.u32 %s0, 4
      %s19 = int_to_ptr.hbm [resolvable:$true] %s18
      %s20 = sshll.u32 [#allocation3], 4
      %s21 = int_to_ptr.vmem [resolvable:$true] %s20
      %23 = dma.hbm_to_vmem [thread:$0]  %s19, 128, %s21, [#allocation4]
    $region5: #{derived_model.1} parent=1 // pred_fallthru
      _
    // Predicated region
    $region6: #{derived_model.1} parent=1 // pred_check
      _
    $region7: #{derived_model.1} parent=1 // pred_check_branch
      %25 = sbr.rel (0) target = $region9
    $region8: #{derived_model.1} parent=1 // pred_region
      %27 = vsyncadd [#allocation6], 0
      %s28 = sshll.u32 %s1, 4
      %s29 = int_to_ptr.hbm [resolvable:$true] %s28
      %s30 = sshll.u32 [#allocation5], 4
      %s31 = int_to_ptr.vmem [resolvable:$true] %s30
      %36 = dma.hbm_to_vmem [thread:$0]  %s29, 512, %s31, [#allocation6], 128, 128, 8
    $region9: #{derived_model.1} parent=1 // pred_fallthru
      _
    // Predicated region
    $region10: #{derived_model.1} parent=1 // pred_check
      _
    $region11: #{derived_model.1} parent=1 // pred_check_branch
      %38 = sbr.rel (0) target = $region13
    $region12: #{derived_model.1} parent=1 // pred_region
      _
    $region13: #{derived_model.1} parent=1 // pred_fallthru
      _
    // Predicated region
    $region14: #{derived_model.1} parent=1 // pred_check
      _
    $region15: #{derived_model.1} parent=1 // pred_check_branch
      %40 = sbr.rel (0) target = $region17
    $region16: #{derived_model.1} parent=1 // pred_region
      _
    $region17: #{derived_model.1} parent=1 // pred_fallthru
      _
    // Predicated region
    $region18: #{derived_model.1} parent=1 // pred_check
      _
    $region19: #{derived_model.1} parent=1 // pred_check_branch
      %42 = sbr.rel (0) target = $region21
    $region20: #{derived_model.1} parent=1 // pred_region
      _
    $region21: #{derived_model.1} parent=1 // pred_fallthru
      _
    // Predicated region
    $region22: #{derived_model.1} parent=1 // pred_check
      _
    $region23: #{derived_model.1} parent=1 // pred_check_branch
      %44 = sbr.rel (0) target = $region25
    $region24: #{derived_model.1} parent=1 // pred_region
      %46 = dma.done [#allocation4], 128
    $region25: #{derived_model.1} parent=1 // pred_fallthru
      _
    // Predicated region
    $region26: #{derived_model.1} parent=1 // pred_check
      _
    $region27: #{derived_model.1} parent=1 // pred_check_branch
      %48 = sbr.rel (0) target = $region29
    $region28: #{derived_model.1} parent=1 // pred_region
      %50 = dma.done [#allocation6], 512
    $region29: #{derived_model.1} parent=1 // pred_fallthru
      _
    %v51 = vld [vmem:[#allocation3] sm:$0xff]
    %v52 = vld [vmem:[#allocation5] sm:$0xff]
    %v53 = vld [vmem:[#allocation5 + $0x8] sm:$0xff]
    %v54 = vld [vmem:[#allocation5 + $0x10] sm:$0xff]
    %v55 = vld [vmem:[#allocation5 + $0x18] sm:$0xff]
    %v56 = vld [vmem:[%s2] sm:$0x1]
    %v58 = vperm.slane %v56, 0
    %vm60 = vcmask 261120
    %v62 = vsel %vm60, %v51, 0
    %v65 = vsel %vm60, %v52, 0
    %v68 = vsel %vm60, %v53, 0
    %v71 = vsel %vm60, %v54, 0
    %v74 = vsel %vm60, %v55, 0
    %76 = vmatpush.xpose.msra.mxu0 0.0
    %77 = vmatpush.xpose.msra.mxu0 0.0
    %78 = vmatpush.xpose.msra.mxu0 0.0
    %79 = vmatpush.xpose.msra.mxu0 0.0
    %80 = vmatpush.xpose.msra.mxu0 0.0
    %81 = vmatpush.xpose.msra.mxu0 0.0
    %82 = vmatpush.xpose.msra.mxu0 0.0
    %83 = vmatpush.xpose.msra.mxu0 0.0
    %84 = vmatpush.xpose.msra.mxu0 0.0
    %85 = vmatpush.xpose.msra.mxu0 0.0
    %86 = vmatpush.xpose.msra.mxu0 0.0
    %87 = vmatpush.xpose.msra.mxu0 0.0
    %88 = vmatpush.xpose.msra.mxu0 %v74
    %89 = vmatpush.xpose.msra.mxu0 %v71
    %90 = vmatpush.xpose.msra.mxu0 %v68
    %91 = vmatpush.xpose.msra.mxu0 %v65
    %92 = vmatmul.f32.gmra.mxu0 %v62
    %v93 = vpop.f32.mrf.mxu0
    %v94 = vadd.f32 %v58, %v93
    %95 = vdwg.mxu0
    %v96 = vmax.f32 %v94, 0.0
    %v97 = vld [vmem:[%s3] sm:$0x1]
    %v99 = vperm.slane %v97, 0
    %v101 = vmul.f32 %v96, %v99
    %v102 = vsel %vm60, %v101, 0.0
    %103 = vadd.xlane.f32.xlu0 %v102
    %v104 = vpop.xlane.xlu0 %103
    %s105 = sld [smem:[#allocation2]]
    %v106 = vstv %s105
    %v107 = vadd.f32 %v104, %v106
    %v108 = vxor.u32 %v107, 2147483648
    %v109 = vmul.f32 %v108, 1.442695
    %v110 = vpow.pop %v109
    %v111 = vadd.f32 %v110, 1.0
    %v112 = vrcp.pop %v111
    %v113 = vmul.f32 %v111, %v112
    %v114 = vsub.f32 1.0, %v113
    %v115 = vmul.f32 %v112, %v114
    %v116 = vadd.f32 %v112, %v115
    %vm117 = vweird.f32 %v111
    %vm118 = vweird.f32 %v112
    %vm119 = vmor %vm117, %vm118
    %v120 = vsel %vm119, %v112, %v116
    %v121 = vand.u32 2147483647, %v111
    %vm122 = vcmp.eq.f32.partialorder %v121, 8.507059e+37
    %v123 = vand.u32 %v111, 2147483648
    %v124 = vor.u32 1.1754944e-38, %v123
    %v125 = vsel %vm122, %v124, %v120
    %v126 = vmul.f32 1.0, %v125
    %vm127 = vcmask 7168
    %128 = vst.msk [vmem:[%s5] sm:$0xff] %vm127, %v126
    // Predicated region
    $region30: #{derived_model.1} parent=1 // pred_check
      _
    $region31: #{derived_model.1} parent=1 // pred_check_branch
      %130 = sbr.rel (0) target = $region33
    $region32: #{derived_model.1} parent=1 // pred_region
      _
    $region33: #{derived_model.1} parent=1 // pred_fallthru
      _
    // Predicated region
    $region34: #{derived_model.1} parent=1 // pred_check
      _
    $region35: #{derived_model.1} parent=1 // pred_check_branch
      %132 = sbr.rel (0) target = $region37
    $region36: #{derived_model.1} parent=1 // pred_region
      _
    $region37: #{derived_model.1} parent=1 // pred_fallthru
      _
    %133 = vsyncpa [#allocation4], 1
    %134 = vsyncpa [#allocation6], 1

</llo_original>
